<compile_context>
chip_gen: v7x
topology: tpu7x:2x2x1
jax: 0.10.0
libtpu: 0.0.40
codegen_flags: <defaults>
</compile_context>

<pallas_src>
import functools

import jax
import jax.numpy as jnp
from jax.experimental import pallas as pl
from jax.experimental.pallas import tpu as pltpu


def _round_up(v, m):
    return ((v + m - 1) // m) * m


def _pad2d(a, rows, cols):
    out = jnp.zeros((rows, cols), a.dtype)
    return out.at[: a.shape[0], : a.shape[1]].set(a)


def _sage_layer_kernel(a_ref, xk_ref, xm_ref, w_ref, b_ref, o_ref, acc_ref, *, apply_relu):
    """One SAGEConv layer.

    Grid = (row tiles, K tiles).  Accumulates agg = A @ X over the K axis in a VMEM f32
    scratch; on the last K step applies the fused linear  concat([agg, x_self]) @ W_stacked
    + bias, optional ReLU, and stores the lane-dense output tile.
    """
    k = pl.program_id(1)

    @pl.when(k == 0)
    def _():
        acc_ref[...] = jnp.zeros_like(acc_ref)

    # Mean aggregation: bf16 MXU matmul, f32 accumulation.
    acc_ref[...] += jnp.dot(a_ref[...], xk_ref[...], preferred_element_type=jnp.float32)

    @pl.when(k == pl.num_programs(1) - 1)
    def _():
        agg = acc_ref[...]                               # [tm, C] f32
        x_self = xm_ref[...].astype(jnp.float32)         # [tm, C] f32
        # Fused lin_l / lin_r: one MXU call against stacked [[W_l],[W_r]].
        z = jnp.concatenate([agg, x_self], axis=-1).astype(jnp.bfloat16)    # [tm, 2C]
        y = jnp.dot(z, w_ref[...], preferred_element_type=jnp.float32) + b_ref[...]
        if apply_relu:
            y = jnp.maximum(y, 0.0)
        o_ref[...] = y.astype(o_ref.dtype)


def _sage_layer(a_norm, x, w_stacked, bias, *, apply_relu, out_dtype, tile_m, tile_k):
    """Run one SAGEConv layer with tiled, pipelined BlockSpecs."""
    n_pad = a_norm.shape[0]
    c_in = x.shape[1]
    c_out = w_stacked.shape[1]
    tm = min(tile_m, n_pad)
    tk = min(tile_k, n_pad)
    assert n_pad % tm == 0 and n_pad % tk == 0, (n_pad, tm, tk)
    grid = (n_pad // tm, n_pad // tk)

    # VMEM budget: double-buffered inputs/outputs + scratch accumulator, with headroom.
    vmem_bytes = (
        2 * tm * tk * a_norm.dtype.itemsize       # adjacency tiles (bf16)
        + 2 * tk * c_in * x.dtype.itemsize        # neighbor-feature tiles
        + 2 * tm * c_in * x.dtype.itemsize        # self-feature tiles
        + 2 * 2 * c_in * c_out * w_stacked.dtype.itemsize
        + 2 * 8 * c_out * 4                       # bias (padded)
        + 2 * tm * c_out * 4                      # output tiles
        + tm * c_in * 4                           # f32 accumulator scratch
    )
    vmem_limit = int(min(max(2 * vmem_bytes, 4 << 20), 64 << 20))

    kernel = functools.partial(_sage_layer_kernel, apply_relu=apply_relu)

    return pl.pallas_call(
        kernel,
        out_shape=jax.ShapeDtypeStruct((n_pad, c_out), out_dtype),
        grid_spec=pltpu.PrefetchScalarGridSpec(
            num_scalar_prefetch=0,
            grid=grid,
            in_specs=[
                pl.BlockSpec((tm, tk), lambda i, k: (i, k)),           # A_norm tile
                pl.BlockSpec((tk, c_in), lambda i, k: (k, 0)),         # neighbor features
                pl.BlockSpec((tm, c_in), lambda i, k: (i, 0)),         # self features
                pl.BlockSpec((2 * c_in, c_out), lambda i, k: (0, 0)),  # stacked [[W_l],[W_r]]
                pl.BlockSpec((1, c_out), lambda i, k: (0, 0)),         # bias
            ],
            out_specs=pl.BlockSpec((tm, c_out), lambda i, k: (i, 0)),
            scratch_shapes=[pltpu.VMEM((tm, c_in), jnp.float32)],
        ),
        compiler_params=pltpu.CompilerParams(
            dimension_semantics=("parallel", "arbitrary"),
            vmem_limit_bytes=vmem_limit,
        ),
    )(a_norm, x, x, w_stacked, bias)


def graphsage_forward(x, edge_index, params, *, tile=256):
    """x: [N, Cin] f32; edge_index: [2, E] int32 (row0=src, row1=dst)."""
    n, in_channels = x.shape
    w1l, w1r, b1, w2l, w2r, b2 = params
    hidden = w1l.shape[1]
    out_channels = w2l.shape[1]

    # --- glue (plain JAX): dense row-normalized adjacency so mean agg == A @ X. ---
    src, dst = edge_index[0], edge_index[1]
    adj = jnp.zeros((n, n), jnp.float32).at[dst, src].add(1.0)
    a_norm = adj / jnp.maximum(adj.sum(axis=1, keepdims=True), 1.0)  # zero in-degree -> 0

    # --- zero-padding: channels to lane multiples of 128, nodes to the tile size. ---
    lane = 128
    c_in = _round_up(in_channels, lane)
    c_hid = _round_up(hidden, lane)
    c_out = _round_up(out_channels, lane)
    n_pad = _round_up(n, lane)
    if n_pad > tile:
        n_pad = _round_up(n, tile)

    a_p = _pad2d(a_norm, n_pad, n_pad).astype(jnp.bfloat16)
    x_p = _pad2d(x, n_pad, c_in).astype(jnp.bfloat16)

    w1 = jnp.concatenate(
        [_pad2d(w1l, c_in, c_hid), _pad2d(w1r, c_in, c_hid)], axis=0
    ).astype(jnp.bfloat16)
    b1_p = _pad2d(b1.reshape(1, -1), 1, c_hid).astype(jnp.float32)
    w2 = jnp.concatenate(
        [_pad2d(w2l, c_hid, c_out), _pad2d(w2r, c_hid, c_out)], axis=0
    ).astype(jnp.bfloat16)
    b2_p = _pad2d(b2.reshape(1, -1), 1, c_out).astype(jnp.float32)

    # Layer 1 (ReLU); h written to HBM in bf16 so layer-2 aggregation sees the full h.
    h = _sage_layer(a_p, x_p, w1, b1_p, apply_relu=True, out_dtype=jnp.bfloat16,
                    tile_m=tile, tile_k=tile)
    # TODO(synk): dropout is identity here (inference mode, training=False).
    y = _sage_layer(a_p, h, w2, b2_p, apply_relu=False, out_dtype=jnp.float32,
                    tile_m=tile, tile_k=tile)
    return y[:n, :out_channels]


def reference_forward_f32(x, edge_index, params):
    """Pure-f32 JAX reference of the original math."""
    n = x.shape[0]
    src, dst = edge_index[0], edge_index[1]
    adj = jnp.zeros((n, n), jnp.float32).at[dst, src].add(1.0)
    a = adj / jnp.maximum(adj.sum(axis=1, keepdims=True), 1.0)
    w1l, w1r, b1, w2l, w2r, b2 = params
    h = jnp.maximum(a @ x @ w1l + x @ w1r + b1, 0.0)
    return a @ h @ w2l + h @ w2r + b2


def reference_forward_bf16(x, edge_index, params):
    """Reference that mimics the kernel's bf16-operand / f32-accumulate numerics."""
    n = x.shape[0]
    src, dst = edge_index[0], edge_index[1]
    adj = jnp.zeros((n, n), jnp.float32).at[dst, src].add(1.0)
    a = (adj / jnp.maximum(adj.sum(axis=1, keepdims=True), 1.0)).astype(jnp.bfloat16)
    w1l, w1r, b1, w2l, w2r, b2 = params

    def layer(xin_b, wl, wr, b, relu, out_dtype):
        agg = jnp.dot(a, xin_b, preferred_element_type=jnp.float32)
        w = jnp.concatenate([wl, wr], axis=0).astype(jnp.bfloat16)
        z = jnp.concatenate([agg, xin_b.astype(jnp.float32)], axis=-1).astype(jnp.bfloat16)
        y = jnp.dot(z, w, preferred_element_type=jnp.float32) + b.reshape(1, -1)
        if relu:
            y = jnp.maximum(y, 0.0)
        return y.astype(out_dtype)

    h = layer(x.astype(jnp.bfloat16), w1l, w1r, b1, True, jnp.bfloat16)
    return layer(h, w2l, w2r, b2, False, jnp.float32)


if __name__ == "__main__":
    # Small deterministic problem: 16 nodes, 48 edges, in=8, hidden=32, out=4.
    N, E = 16, 48
    in_channels, hidden_channels, out_channels = 8, 32, 4

    key = jax.random.PRNGKey(0)
    k_x, k_src, k_dst, k1, k2, k3, k4, k5, k6 = jax.random.split(key, 9)

    x = jax.random.normal(k_x, (N, in_channels), dtype=jnp.float32)
    edge_index = jnp.stack([
        jax.random.randint(k_src, (E,), 0, N, dtype=jnp.int32),
        jax.random.randint(k_dst, (E,), 0, N, dtype=jnp.int32),
    ], axis=0)

    def glorot(k, shape):
        fan_in, fan_out = shape
        lim = (6.0 / (fan_in + fan_out)) ** 0.5
        return jax.random.uniform(k, shape, jnp.float32, -lim, lim)

    # Weights stored [in, out]; lin_l has bias, lin_r has no bias (PyG default).
    params = (
        glorot(k1, (in_channels, hidden_channels)),                        # W1_l
        glorot(k2, (in_channels, hidden_channels)),                        # W1_r
        jax.random.normal(k3, (1, hidden_channels), jnp.float32) * 0.01,   # b1
        glorot(k4, (hidden_channels, out_channels)),                       # W2_l
        glorot(k5, (hidden_channels, out_channels)),                       # W2_r
        jax.random.normal(k6, (1, out_channels), jnp.float32) * 0.01,      # b2
    )

    out = jax.block_until_ready(graphsage_forward(x, edge_index, params))
    assert out.shape == (N, out_channels)

    ref_bf16 = reference_forward_bf16(x, edge_index, params)
    ref_f32 = reference_forward_f32(x, edge_index, params)
    assert jnp.allclose(out, ref_bf16, atol=2e-3, rtol=2e-3), "mismatch vs bf16-matched reference"
    assert jnp.allclose(out, ref_f32, atol=1e-1, rtol=1e-1), "mismatch vs f32 reference"

    print("KERNEL_OK")
</pallas_src>

<mosaic_0001>
module attributes {stable_mosaic.version = 11 : i64} {
  func.func @_sage_layer_kernel(%arg0: i32, %arg1: i32, %arg2: memref<128x128xbf16, #tpu.memory_space<vmem>>, %arg3: memref<128x128xbf16, #tpu.memory_space<vmem>>, %arg4: memref<128x128xbf16, #tpu.memory_space<vmem>>, %arg5: memref<256x128xbf16, #tpu.memory_space<vmem>>, %arg6: memref<1x128xf32, #tpu.memory_space<vmem>>, %arg7: memref<128x128xbf16, #tpu.memory_space<vmem>>, %arg8: memref<128x128xf32, #tpu.memory_space<vmem>>) attributes {dimension_semantics = [#tpu.dimension_semantics<parallel>, #tpu.dimension_semantics<arbitrary>], iteration_bounds = array<i64: 1, 1>, scalar_prefetch = 0 : i64, scratch_operands = 1 : i64, tpu.core_type = #tpu.core_type<tc>, window_params = [{transform_indices = @transform_0, window_bounds = array<i64: 128, 128>}, {transform_indices = @transform_1, window_bounds = array<i64: 128, 128>}, {transform_indices = @transform_2, window_bounds = array<i64: 128, 128>}, {pipeline_mode = #tpu.pipeline_mode<synchronous>, transform_indices = @transform_3, window_bounds = array<i64: 256, 128>}, {pipeline_mode = #tpu.pipeline_mode<synchronous>, transform_indices = @transform_4, window_bounds = array<i64: 1, 128>}, {transform_indices = @transform_5, window_bounds = array<i64: 128, 128>}]} {
    %c0_i32 = arith.constant 0 : i32
    %0 = arith.cmpi eq, %arg1, %c0_i32 : i32
    %1 = arith.extui %0 : i1 to i32
    %c0_i32_0 = arith.constant 0 : i32
    %2 = arith.cmpi ne, %1, %c0_i32_0 : i32
    scf.if %2 {
      %cst_10 = arith.constant 0.000000e+00 : f32
      %12 = vector.broadcast %cst_10 : f32 to vector<128x128xf32>
      %c0_11 = arith.constant 0 : index
      %c0_12 = arith.constant 0 : index
      %13 = vector.load %arg8[%c0_11, %c0_12] : memref<128x128xf32, #tpu.memory_space<vmem>>, vector<128x128xf32>
      tpu.vector_store %arg8[%c0_11, %c0_12], %12 {strides = array<i32>} : memref<128x128xf32, #tpu.memory_space<vmem>>, vector<128x128xf32>,
    } else {
    }
    %c0 = arith.constant 0 : index
    %c0_1 = arith.constant 0 : index
    %3 = vector.load %arg8[%c0, %c0_1] : memref<128x128xf32, #tpu.memory_space<vmem>>, vector<128x128xf32>
    %c0_2 = arith.constant 0 : index
    %c0_3 = arith.constant 0 : index
    %4 = vector.load %arg2[%c0_2, %c0_3] : memref<128x128xbf16, #tpu.memory_space<vmem>>, vector<128x128xbf16>
    %c0_4 = arith.constant 0 : index
    %c0_5 = arith.constant 0 : index
    %5 = vector.load %arg3[%c0_4, %c0_5] : memref<128x128xbf16, #tpu.memory_space<vmem>>, vector<128x128xbf16>
    %cst = arith.constant dense<0.000000e+00> : vector<128x128xf32>
    %6 = tpu.matmul %4, %5, %cst {dimension_numbers = #tpu.dot_dimension_numbers<[1], [0], [0], [1], [0, 0, 1, 1], [], []>} : vector<128x128xbf16>, vector<128x128xbf16>, vector<128x128xf32> -> vector<128x128xf32>
    %7 = arith.addf %3, %6 : vector<128x128xf32>
    %c0_6 = arith.constant 0 : index
    %c0_7 = arith.constant 0 : index
    %8 = vector.load %arg8[%c0_6, %c0_7] : memref<128x128xf32, #tpu.memory_space<vmem>>, vector<128x128xf32>
    tpu.vector_store %arg8[%c0_6, %c0_7], %7 {strides = array<i32>} : memref<128x128xf32, #tpu.memory_space<vmem>>, vector<128x128xf32>,
    %c0_i32_8 = arith.constant 0 : i32
    %9 = arith.cmpi eq, %arg1, %c0_i32_8 : i32
    %10 = arith.extui %9 : i1 to i32
    %c0_i32_9 = arith.constant 0 : i32
    %11 = arith.cmpi ne, %10, %c0_i32_9 : i32
    scf.if %11 {
      %c0_10 = arith.constant 0 : index
      %c0_11 = arith.constant 0 : index
      %12 = vector.load %arg8[%c0_10, %c0_11] : memref<128x128xf32, #tpu.memory_space<vmem>>, vector<128x128xf32>
      %c0_12 = arith.constant 0 : index
      %c0_13 = arith.constant 0 : index
      %13 = vector.load %arg4[%c0_12, %c0_13] : memref<128x128xbf16, #tpu.memory_space<vmem>>, vector<128x128xbf16>
      %14 = arith.extf %13 : vector<128x128xbf16> to vector<128x128xf32>
      %15 = tpu.concatenate %12, %14 in 1 : vector<128x128xf32>, vector<128x128xf32> -> vector<128x256xf32>
      %16 = arith.truncf %15 : vector<128x256xf32> to vector<128x256xbf16>
      %c0_14 = arith.constant 0 : index
      %c0_15 = arith.constant 0 : index
      %17 = vector.load %arg5[%c0_14, %c0_15] : memref<256x128xbf16, #tpu.memory_space<vmem>>, vector<256x128xbf16>
      %cst_16 = arith.constant dense<0.000000e+00> : vector<128x128xf32>
      %18 = tpu.matmul %16, %17, %cst_16 {dimension_numbers = #tpu.dot_dimension_numbers<[1], [0], [0], [1], [0, 0, 1, 1], [], []>} : vector<128x256xbf16>, vector<256x128xbf16>, vector<128x128xf32> -> vector<128x128xf32>
      %c0_17 = arith.constant 0 : index
      %c0_18 = arith.constant 0 : index
      %19 = vector.load %arg6[%c0_17, %c0_18] : memref<1x128xf32, #tpu.memory_space<vmem>>, vector<1x128xf32>
      %20 = vector.broadcast %19 : vector<1x128xf32> to vector<128x128xf32>
      %21 = arith.addf %18, %20 : vector<128x128xf32>
      %cst_19 = arith.constant 0.000000e+00 : f32
      %22 = vector.broadcast %cst_19 : f32 to vector<128x128xf32>
      %23 = arith.maximumf %21, %22 : vector<128x128xf32>
      %24 = arith.truncf %23 : vector<128x128xf32> to vector<128x128xbf16>
      %c0_20 = arith.constant 0 : index
      %c0_21 = arith.constant 0 : index
      %25 = vector.load %arg7[%c0_20, %c0_21] : memref<128x128xbf16, #tpu.memory_space<vmem>>, vector<128x128xbf16>
      tpu.vector_store %arg7[%c0_20, %c0_21], %24 {strides = array<i32>} : memref<128x128xbf16, #tpu.memory_space<vmem>>, vector<128x128xbf16>,
    } else {
    }
    return
  }
  func.func @transform_0(%arg0: i32, %arg1: i32) -> (i32, i32) {
    %c0_i32 = arith.constant 0 : i32
    return %arg0, %arg1 : i32, i32
  }
  func.func @transform_1(%arg0: i32, %arg1: i32) -> (i32, i32) {
    %c0_i32 = arith.constant 0 : i32
    %c0_i32_0 = arith.constant 0 : i32
    return %arg1, %c0_i32 : i32, i32
  }
  func.func @transform_2(%arg0: i32, %arg1: i32) -> (i32, i32) {
    %c0_i32 = arith.constant 0 : i32
    %c0_i32_0 = arith.constant 0 : i32
    return %arg0, %c0_i32 : i32, i32
  }
  func.func @transform_3(%arg0: i32, %arg1: i32) -> (i32, i32) {
    %c0_i32 = arith.constant 0 : i32
    %c0_i32_0 = arith.constant 0 : i32
    %c0_i32_1 = arith.constant 0 : i32
    return %c0_i32, %c0_i32_0 : i32, i32
  }
  func.func @transform_4(%arg0: i32, %arg1: i32) -> (i32, i32) {
    %c0_i32 = arith.constant 0 : i32
    %c0_i32_0 = arith.constant 0 : i32
    %c0_i32_1 = arith.constant 0 : i32
    return %c0_i32, %c0_i32_0 : i32, i32
  }
  func.func @transform_5(%arg0: i32, %arg1: i32) -> (i32, i32) {
    %c0_i32 = arith.constant 0 : i32
    %c0_i32_0 = arith.constant 0 : i32
    return %arg0, %c0_i32 : i32, i32
  }
}

</mosaic_0001>

<llo_original>
// kernel: tpu_custom_call.1
$region0: #{tpu_custom_call.1}
  #allocation0 [shape = 'u32[]', space=smem, size = 0x4, offset = 0x4, fixed_abs, tag = 'smem constant byte address 0x4 - core index']
  #allocation1 [shape = 'u32[144,128]{1,0:T(1,128)}', space=vmem, size = 0x12000, scoped, tag = 'internal scratch']
  #allocation2 [shape = 'f32[128,128]{1,0:T(8,128)}', space=vmem, size = 0x10000, scoped, tag = 'scratch operand']
  %s0 = inlined_call_operand.hbm [shape: bf16[128,128], index: 0, kind: input, shape index: {}]
  %s1 = inlined_call_operand.hbm [shape: bf16[128,128], index: 1, kind: input, shape index: {}]
  %s2 = inlined_call_operand.hbm [shape: bf16[128,128], index: 2, kind: input, shape index: {}]
  %s3 = inlined_call_operand.hbm [shape: bf16[256,128], index: 3, kind: input, shape index: {}]
  %s4 = inlined_call_operand.vmem [shape: f32[1,128], index: 4, kind: input, shape index: {}]
  %s5 = inlined_call_operand.hbm [shape: bf16[128,128], index: 5, kind: output, shape index: {}]
  %s6 = sld [smem:[#allocation0]]
  $region54: #{tpu_custom_call.1} parent=0
    _
  %s8 = ssub.s32 1, %s6
  %s9 = scalar_select 0, %s8, %s6
  $region1: #{tpu_custom_call.1} parent=0
    #allocation3 [shape = 'u8[32768]{0}', space=vmem, size = 0x8000, scoped, tag = 'input window, operand 0, single buffered']
    #allocation4 [shape = 's32[1]{0}', space=sflag, size = 0x4, scoped, tag = 'scoped memory for tpu_custom_call.1']
    #allocation5 [shape = 's32[1]{0}', space=sflag, size = 0x4, scoped, tag = 'scoped memory for tpu_custom_call.1']
    #allocation6 [shape = 'u8[32768]{0}', space=vmem, size = 0x8000, scoped, tag = 'input window, operand 1, single buffered']
    #allocation7 [shape = 's32[1]{0}', space=sflag, size = 0x4, scoped, tag = 'scoped memory for tpu_custom_call.1']
    #allocation8 [shape = 'u8[32768]{0}', space=vmem, size = 0x8000, scoped, tag = 'input window, operand 2, single buffered']
    #allocation9 [shape = 'u8[65536]{0}', space=vmem, size = 0x10000, scoped, tag = 'input window, operand 3, single buffered']
    #allocation10 [shape = 's32[1]{0}', space=sflag, size = 0x4, scoped, tag = 'scoped memory for tpu_custom_call.1']
    #allocation11 [shape = 'u8[32768]{0}', space=vmem, size = 0x8000, scoped, tag = 'output window, operand 0, single buffered']
    %10 = vsyncpa [#allocation4], 0
    %11 = vsyncpa [#allocation7], 0
    %12 = vsyncpa [#allocation10], 0
    %13 = vsyncpa [#allocation5], 0
    // Predicated region
    $region2: #{tpu_custom_call.1} parent=1 // pred_check
      _
    $region3: #{tpu_custom_call.1} parent=1 // pred_check_branch
      %15 = sbr.rel (0) target = $region5
    $region4: #{tpu_custom_call.1} parent=1 // pred_region
      %s17 = ssub.s32 1024, 1024
      %18 = vsyncadd [#allocation4], %s17
      %s19 = sshll.u32 [#allocation3], 4
      %s20 = int_to_ptr.vmem [resolvable:$true] %s19
      %25 = dma.hbm_to_vmem [thread:$0]  %s0, 1024, %s20, [#allocation4], 64, 64, 4
    $region5: #{tpu_custom_call.1} parent=1 // pred_fallthru
      _
    // Predicated region
    $region6: #{tpu_custom_call.1} parent=1 // pred_check
      _
    $region7: #{tpu_custom_call.1} parent=1 // pred_check_branch
      %27 = sbr.rel (0) target = $region9
    $region8: #{tpu_custom_call.1} parent=1 // pred_region
      %s29 = ssub.s32 1024, 1024
      %30 = vsyncadd [#allocation7], %s29
      %s31 = sshll.u32 [#allocation6], 4
      %s32 = int_to_ptr.vmem [resolvable:$true] %s31
      %37 = dma.hbm_to_vmem [thread:$0]  %s1, 1024, %s32, [#allocation7], 64, 64, 4
    $region9: #{tpu_custom_call.1} parent=1 // pred_fallthru
      _
    // Predicated region
    $region10: #{tpu_custom_call.1} parent=1 // pred_check
      _
    $region11: #{tpu_custom_call.1} parent=1 // pred_check_branch
      %39 = sbr.rel (0) target = $region13
    $region12: #{tpu_custom_call.1} parent=1 // pred_region
      %s41 = ssub.s32 1024, 1024
      %42 = vsyncadd [#allocation7], %s41
      %s43 = sshll.u32 [#allocation8], 4
      %s44 = int_to_ptr.vmem [resolvable:$true] %s43
      %49 = dma.hbm_to_vmem [thread:$0]  %s2, 1024, %s44, [#allocation7], 64, 64, 4
    $region13: #{tpu_custom_call.1} parent=1 // pred_fallthru
      _
    // Predicated region
    $region14: #{tpu_custom_call.1} parent=1 // pred_check
      _
    $region15: #{tpu_custom_call.1} parent=1 // pred_check_branch
      %51 = sbr.rel (0) target = $region17
    $region16: #{tpu_custom_call.1} parent=1 // pred_region
      %s53 = ssub.s32 2048, 2048
      %54 = vsyncadd [#allocation10], %s53
      %s55 = sshll.u32 [#allocation9], 4
      %s56 = int_to_ptr.vmem [resolvable:$true] %s55
      %61 = dma.hbm_to_vmem [thread:$0]  %s3, 2048, %s56, [#allocation10], 64, 64, 4
    $region17: #{tpu_custom_call.1} parent=1 // pred_fallthru
      _
    // Predicated region
    $region18: #{tpu_custom_call.1} parent=1 // pred_check
      _
    $region19: #{tpu_custom_call.1} parent=1 // pred_check_branch
      %63 = sbr.rel (0) target = $region21
    $region20: #{tpu_custom_call.1} parent=1 // pred_region
      _
    $region21: #{tpu_custom_call.1} parent=1 // pred_fallthru
      _
    // Predicated region
    $region22: #{tpu_custom_call.1} parent=1 // pred_check
      _
    $region23: #{tpu_custom_call.1} parent=1 // pred_check_branch
      %65 = sbr.rel (0) target = $region25
    $region24: #{tpu_custom_call.1} parent=1 // pred_region
      %66 = dma.done [#allocation4], 1024
    $region25: #{tpu_custom_call.1} parent=1 // pred_fallthru
      _
    // Predicated region
    $region26: #{tpu_custom_call.1} parent=1 // pred_check
      _
    $region27: #{tpu_custom_call.1} parent=1 // pred_check_branch
      %68 = sbr.rel (0) target = $region29
    $region28: #{tpu_custom_call.1} parent=1 // pred_region
      %69 = dma.done [#allocation7], 1024
    $region29: #{tpu_custom_call.1} parent=1 // pred_fallthru
      _
    // Predicated region
    $region30: #{tpu_custom_call.1} parent=1 // pred_check
      _
    $region31: #{tpu_custom_call.1} parent=1 // pred_check_branch
      %71 = sbr.rel (0) target = $region33
    $region32: #{tpu_custom_call.1} parent=1 // pred_region
      %72 = dma.done [#allocation7], 1024
    $region33: #{tpu_custom_call.1} parent=1 // pred_fallthru
      _
    // Predicated region
    $region34: #{tpu_custom_call.1} parent=1 // pred_check
      _
    $region35: #{tpu_custom_call.1} parent=1 // pred_check_branch
      %74 = sbr.rel (0) target = $region37
    $region36: #{tpu_custom_call.1} parent=1 // pred_region
      %75 = dma.done [#allocation10], 2048
    $region37: #{tpu_custom_call.1} parent=1 // pred_fallthru
      _
    %p77 = scmp.eq.s32.totalorder 0, 0
    // Predicated region
    $region38: #{tpu_custom_call.1} parent=1 // pred_check
      %p78 = pneg %p77
    $region39: #{tpu_custom_call.1} parent=1 // pred_check_branch
      %80 = sbr.rel (%p78) target = $region41
    $region40: #{tpu_custom_call.1} parent=1 // pred_region
      %81 = vst [vmem:[#allocation2] sm:$0xff] 0.0
      %82 = vst [vmem:[#allocation2 + $0x8] sm:$0xff] 0.0
      %83 = vst [vmem:[#allocation2 + $0x10] sm:$0xff] 0.0
      %84 = vst [vmem:[#allocation2 + $0x18] sm:$0xff] 0.0
      %85 = vst [vmem:[#allocation2 + $0x20] sm:$0xff] 0.0
      %86 = vst [vmem:[#allocation2 + $0x28] sm:$0xff] 0.0
      %87 = vst [vmem:[#allocation2 + $0x30] sm:$0xff] 0.0
      %88 = vst [vmem:[#allocation2 + $0x38] sm:$0xff] 0.0
      %89 = vst [vmem:[#allocation2 + $0x40] sm:$0xff] 0.0
      %90 = vst [vmem:[#allocation2 + $0x48] sm:$0xff] 0.0
      %91 = vst [vmem:[#allocation2 + $0x50] sm:$0xff] 0.0
      %92 = vst [vmem:[#allocation2 + $0x58] sm:$0xff] 0.0
      %93 = vst [vmem:[#allocation2 + $0x60] sm:$0xff] 0.0
      %94 = vst [vmem:[#allocation2 + $0x68] sm:$0xff] 0.0
      %95 = vst [vmem:[#allocation2 + $0x70] sm:$0xff] 0.0
      %96 = vst [vmem:[#allocation2 + $0x78] sm:$0xff] 0.0
    $region41: #{tpu_custom_call.1} parent=1 // pred_fallthru
      _
    %v97 = vld [vmem:[#allocation2] sm:$0xff]
    %v98 = vld [vmem:[#allocation2 + $0x8] sm:$0xff]
    %v99 = vld [vmem:[#allocation2 + $0x10] sm:$0xff]
    %v100 = vld [vmem:[#allocation2 + $0x18] sm:$0xff]
    %v101 = vld [vmem:[#allocation2 + $0x20] sm:$0xff]
    %v102 = vld [vmem:[#allocation2 + $0x28] sm:$0xff]
    %v103 = vld [vmem:[#allocation2 + $0x30] sm:$0xff]
    %v104 = vld [vmem:[#allocation2 + $0x38] sm:$0xff]
    %v105 = vld [vmem:[#allocation2 + $0x40] sm:$0xff]
    %v106 = vld [vmem:[#allocation2 + $0x48] sm:$0xff]
    %v107 = vld [vmem:[#allocation2 + $0x50] sm:$0xff]
    %v108 = vld [vmem:[#allocation2 + $0x58] sm:$0xff]
    %v109 = vld [vmem:[#allocation2 + $0x60] sm:$0xff]
    %v110 = vld [vmem:[#allocation2 + $0x68] sm:$0xff]
    %v111 = vld [vmem:[#allocation2 + $0x70] sm:$0xff]
    %v112 = vld [vmem:[#allocation2 + $0x78] sm:$0xff]
    %v113 = vld [vmem:[#allocation3] sm:$0xf]
    %v114 = vld [vmem:[#allocation3 + $0x4] sm:$0xf]
    %v115 = vld [vmem:[#allocation3 + $0x8] sm:$0xf]
    %v116 = vld [vmem:[#allocation3 + $0xc] sm:$0xf]
    %v117 = vld [vmem:[#allocation3 + $0x10] sm:$0xf]
    %v118 = vld [vmem:[#allocation3 + $0x14] sm:$0xf]
    %v119 = vld [vmem:[#allocation3 + $0x18] sm:$0xf]
    %v120 = vld [vmem:[#allocation3 + $0x1c] sm:$0xf]
    %v121 = vld [vmem:[#allocation3 + $0x20] sm:$0xf]
    %v122 = vld [vmem:[#allocation3 + $0x24] sm:$0xf]
    %v123 = vld [vmem:[#allocation3 + $0x28] sm:$0xf]
    %v124 = vld [vmem:[#allocation3 + $0x2c] sm:$0xf]
    %v125 = vld [vmem:[#allocation3 + $0x30] sm:$0xf]
    %v126 = vld [vmem:[#allocation3 + $0x34] sm:$0xf]
    %v127 = vld [vmem:[#allocation3 + $0x38] sm:$0xf]
    %v128 = vld [vmem:[#allocation3 + $0x3c] sm:$0xf]
    %v129 = vld [vmem:[#allocation6] sm:$0xf]
    %v130 = vld [vmem:[#allocation6 + $0x4] sm:$0xf]
    %v131 = vld [vmem:[#allocation6 + $0x8] sm:$0xf]
    %v132 = vld [vmem:[#allocation6 + $0xc] sm:$0xf]
    %v133 = vld [vmem:[#allocation6 + $0x10] sm:$0xf]
    %v134 = vld [vmem:[#allocation6 + $0x14] sm:$0xf]
    %v135 = vld [vmem:[#allocation6 + $0x18] sm:$0xf]
    %v136 = vld [vmem:[#allocation6 + $0x1c] sm:$0xf]
    %v137 = vld [vmem:[#allocation6 + $0x20] sm:$0xf]
    %v138 = vld [vmem:[#allocation6 + $0x24] sm:$0xf]
    %v139 = vld [vmem:[#allocation6 + $0x28] sm:$0xf]
    %v140 = vld [vmem:[#allocation6 + $0x2c] sm:$0xf]
    %v141 = vld [vmem:[#allocation6 + $0x30] sm:$0xf]
    %v142 = vld [vmem:[#allocation6 + $0x34] sm:$0xf]
    %v143 = vld [vmem:[#allocation6 + $0x38] sm:$0xf]
    %v144 = vld [vmem:[#allocation6 + $0x3c] sm:$0xf]
    %v161 = vunpack.c.l.b16 %v113
    %v162 = vunpack.c.l.b16 %v114
    %v163 = vunpack.c.l.b16 %v115
    %v164 = vunpack.c.l.b16 %v116
    %v165 = vunpack.c.l.b16 %v117
    %v166 = vunpack.c.l.b16 %v118
    %v167 = vunpack.c.l.b16 %v119
    %v168 = vunpack.c.l.b16 %v120
    %v169 = vunpack.c.l.b16 %v121
    %v170 = vunpack.c.l.b16 %v122
    %v171 = vunpack.c.l.b16 %v123
    %v172 = vunpack.c.l.b16 %v124
    %v173 = vunpack.c.l.b16 %v125
    %v174 = vunpack.c.l.b16 %v126
    %v175 = vunpack.c.l.b16 %v127
    %v176 = vunpack.c.l.b16 %v128
    %v177 = vpack.c.b16 %v162, %v161
    %v178 = vpack.c.b16 %v164, %v163
    %v179 = vpack.c.b16 %v166, %v165
    %v180 = vpack.c.b16 %v168, %v167
    %v181 = vpack.c.b16 %v170, %v169
    %v182 = vpack.c.b16 %v172, %v171
    %v183 = vpack.c.b16 %v174, %v173
    %v184 = vpack.c.b16 %v176, %v175
    %v209 = vunpack.c.l.b16 %v129
    %v210 = vunpack.c.l.b16 %v130
    %v211 = vunpack.c.l.b16 %v131
    %v212 = vunpack.c.l.b16 %v132
    %v213 = vunpack.c.l.b16 %v133
    %v214 = vunpack.c.l.b16 %v134
    %v215 = vunpack.c.l.b16 %v135
    %v216 = vunpack.c.l.b16 %v136
    %v217 = vunpack.c.l.b16 %v137
    %v218 = vunpack.c.l.b16 %v138
    %v219 = vunpack.c.l.b16 %v139
    %v220 = vunpack.c.l.b16 %v140
    %v221 = vunpack.c.l.b16 %v141
    %v222 = vunpack.c.l.b16 %v142
    %v223 = vunpack.c.l.b16 %v143
    %v224 = vunpack.c.l.b16 %v144
    %v225 = vpack.c.b16 %v210, %v209
    %v226 = vpack.c.b16 %v212, %v211
    %v227 = vpack.c.b16 %v214, %v213
    %v228 = vpack.c.b16 %v216, %v215
    %v229 = vpack.c.b16 %v218, %v217
    %v230 = vpack.c.b16 %v220, %v219
    %v231 = vpack.c.b16 %v222, %v221
    %v232 = vpack.c.b16 %v224, %v223
    %241 = vmatprep.subr.bf16.mxu0 0
    %242 = vmatpush1.bf16.msra.mxu0 %v225
    %243 = vmatprep.subr.bf16.mxu0 0
    %244 = vmatpush1.bf16.msra.mxu0 %v226
    %245 = vmatprep.subr.bf16.mxu0 0
    %246 = vmatpush1.bf16.msra.mxu0 %v227
    %247 = vmatprep.subr.bf16.mxu0 0
    %248 = vmatpush1.bf16.msra.mxu0 %v228
    %249 = vmatprep.subr.bf16.mxu0 0
    %250 = vmatpush1.bf16.msra.mxu0 %v229
    %251 = vmatprep.subr.bf16.mxu0 0
    %252 = vmatpush1.bf16.msra.mxu0 %v230
    %253 = vmatprep.subr.bf16.mxu0 0
    %254 = vmatpush1.bf16.msra.mxu0 %v231
    %255 = vmatprep.subr.bf16.mxu0 0
    %256 = vmatpush1.bf16.msra.mxu0 %v232
    %257 = vmatprep.subr.bf16.mxu0 0
    %258 = vmatpush1.bf16.msra.mxu0 0
    %259 = vmatprep.subr.bf16.mxu0 0
    %260 = vmatpush1.bf16.msra.mxu0 0
    %261 = vmatprep.subr.bf16.mxu0 0
    %262 = vmatpush1.bf16.msra.mxu0 0
    %263 = vmatprep.subr.bf16.mxu0 0
    %264 = vmatpush1.bf16.msra.mxu0 0
    %265 = vmatprep.subr.bf16.mxu0 0
    %266 = vmatpush1.bf16.msra.mxu0 0
    %267 = vmatprep.subr.bf16.mxu0 0
    %268 = vmatpush1.bf16.msra.mxu0 0
    %269 = vmatprep.subr.bf16.mxu0 0
    %270 = vmatpush1.bf16.msra.mxu0 0
    %271 = vmatprep.subr.bf16.mxu0 0
    %272 = vmatpush1.bf16.msra.mxu0 0
    %273 = vmatprep.mubr.bf16.mxu0 0
    %274 = vmatmul.mubr.bf16.gmra.mrb[0].mxu0 %v177
    %v275 = vpop.f32.mrb[0].mxu0
    %v276 = vadd.f32 0.0, %v275
    %v277 = vpop.f32.mrb[0].mxu0
    %v278 = vpop.f32.mrb[0].mxu0
    %v279 = vadd.f32 0.0, %v278
    %v280 = vpop.f32.mrb[0].mxu0
    %281 = vmatprep.mubr.bf16.mxu0 0
    %282 = vmatmul.mubr.bf16.gmra.mrb[0].mxu0 %v178
    %v283 = vpop.f32.mrb[0].mxu0
    %v284 = vadd.f32 0.0, %v283
    %v285 = vpop.f32.mrb[0].mxu0
    %v286 = vpop.f32.mrb[0].mxu0
    %v287 = vadd.f32 0.0, %v286
    %v288 = vpop.f32.mrb[0].mxu0
    %289 = vmatprep.mubr.bf16.mxu0 0
    %290 = vmatmul.mubr.bf16.gmra.mrb[0].mxu0 %v179
    %v291 = vpop.f32.mrb[0].mxu0
    %v292 = vadd.f32 0.0, %v291
    %v293 = vpop.f32.mrb[0].mxu0
    %v294 = vpop.f32.mrb[0].mxu0
    %v295 = vadd.f32 0.0, %v294
    %v296 = vpop.f32.mrb[0].mxu0
    %297 = vmatprep.mubr.bf16.mxu0 0
    %298 = vmatmul.mubr.bf16.gmra.mrb[0].mxu0 %v180
    %v299 = vpop.f32.mrb[0].mxu0
    %v300 = vadd.f32 0.0, %v299
    %v301 = vpop.f32.mrb[0].mxu0
    %v302 = vpop.f32.mrb[0].mxu0
    %v303 = vadd.f32 0.0, %v302
    %v304 = vpop.f32.mrb[0].mxu0
    %305 = vmatprep.mubr.bf16.mxu0 0
    %306 = vmatmul.mubr.bf16.gmra.mrb[0].mxu0 %v181
    %v307 = vpop.f32.mrb[0].mxu0
    %v308 = vadd.f32 0.0, %v307
    %v309 = vpop.f32.mrb[0].mxu0
    %v310 = vpop.f32.mrb[0].mxu0
    %v311 = vadd.f32 0.0, %v310
    %v312 = vpop.f32.mrb[0].mxu0
    %313 = vmatprep.mubr.bf16.mxu0 0
    %314 = vmatmul.mubr.bf16.gmra.mrb[0].mxu0 %v182
    %v315 = vpop.f32.mrb[0].mxu0
    %v316 = vadd.f32 0.0, %v315
    %v317 = vpop.f32.mrb[0].mxu0
    %v318 = vpop.f32.mrb[0].mxu0
    %v319 = vadd.f32 0.0, %v318
    %v320 = vpop.f32.mrb[0].mxu0
    %321 = vmatprep.mubr.bf16.mxu0 0
    %322 = vmatmul.mubr.bf16.gmra.mrb[0].mxu0 %v183
    %v323 = vpop.f32.mrb[0].mxu0
    %v324 = vadd.f32 0.0, %v323
    %v325 = vpop.f32.mrb[0].mxu0
    %v326 = vpop.f32.mrb[0].mxu0
    %v327 = vadd.f32 0.0, %v326
    %v328 = vpop.f32.mrb[0].mxu0
    %329 = vmatprep.mubr.bf16.mxu0 0
    %330 = vmatmul.mubr.bf16.gmra.mrb[0].mxu0 %v184
    %v331 = vpop.f32.mrb[0].mxu0
    %v332 = vadd.f32 0.0, %v331
    %v333 = vpop.f32.mrb[0].mxu0
    %v334 = vpop.f32.mrb[0].mxu0
    %v335 = vadd.f32 0.0, %v334
    %v336 = vpop.f32.mrb[0].mxu0
    %337 = vdwg.mxu0
    %v338 = vadd.f32 %v97, %v276
    %v339 = vadd.f32 %v98, %v279
    %v340 = vadd.f32 %v99, %v284
    %v341 = vadd.f32 %v100, %v287
    %v342 = vadd.f32 %v101, %v292
    %v343 = vadd.f32 %v102, %v295
    %v344 = vadd.f32 %v103, %v300
    %v345 = vadd.f32 %v104, %v303
    %v346 = vadd.f32 %v105, %v308
    %v347 = vadd.f32 %v106, %v311
    %v348 = vadd.f32 %v107, %v316
    %v349 = vadd.f32 %v108, %v319
    %v350 = vadd.f32 %v109, %v324
    %v351 = vadd.f32 %v110, %v327
    %v352 = vadd.f32 %v111, %v332
    %v353 = vadd.f32 %v112, %v335
    %354 = vst [vmem:[#allocation2] sm:$0xff] %v338
    %355 = vst [vmem:[#allocation2 + $0x8] sm:$0xff] %v339
    %356 = vst [vmem:[#allocation2 + $0x10] sm:$0xff] %v340
    %357 = vst [vmem:[#allocation2 + $0x18] sm:$0xff] %v341
    %358 = vst [vmem:[#allocation2 + $0x20] sm:$0xff] %v342
    %359 = vst [vmem:[#allocation2 + $0x28] sm:$0xff] %v343
    %360 = vst [vmem:[#allocation2 + $0x30] sm:$0xff] %v344
    %361 = vst [vmem:[#allocation2 + $0x38] sm:$0xff] %v345
    %362 = vst [vmem:[#allocation2 + $0x40] sm:$0xff] %v346
    %363 = vst [vmem:[#allocation2 + $0x48] sm:$0xff] %v347
    %364 = vst [vmem:[#allocation2 + $0x50] sm:$0xff] %v348
    %365 = vst [vmem:[#allocation2 + $0x58] sm:$0xff] %v349
    %366 = vst [vmem:[#allocation2 + $0x60] sm:$0xff] %v350
    %367 = vst [vmem:[#allocation2 + $0x68] sm:$0xff] %v351
    %368 = vst [vmem:[#allocation2 + $0x70] sm:$0xff] %v352
    %369 = vst [vmem:[#allocation2 + $0x78] sm:$0xff] %v353
    // Predicated region
    $region42: #{tpu_custom_call.1} parent=1 // pred_check
      %p370 = pneg %p77
    $region43: #{tpu_custom_call.1} parent=1 // pred_check_branch
      %372 = sbr.rel (%p370) target = $region45
    $region44: #{tpu_custom_call.1} parent=1 // pred_region
      %v373 = vld [vmem:[#allocation2] sm:$0xff]
      %v374 = vld [vmem:[#allocation2 + $0x8] sm:$0xff]
      %v375 = vld [vmem:[#allocation2 + $0x10] sm:$0xff]
      %v376 = vld [vmem:[#allocation2 + $0x18] sm:$0xff]
      %v377 = vld [vmem:[#allocation2 + $0x20] sm:$0xff]
      %v378 = vld [vmem:[#allocation2 + $0x28] sm:$0xff]
      %v379 = vld [vmem:[#allocation2 + $0x30] sm:$0xff]
      %v380 = vld [vmem:[#allocation2 + $0x38] sm:$0xff]
      %v381 = vld [vmem:[#allocation2 + $0x40] sm:$0xff]
      %v382 = vld [vmem:[#allocation2 + $0x48] sm:$0xff]
      %v383 = vld [vmem:[#allocation2 + $0x50] sm:$0xff]
      %v384 = vld [vmem:[#allocation2 + $0x58] sm:$0xff]
      %v385 = vld [vmem:[#allocation2 + $0x60] sm:$0xff]
      %v386 = vld [vmem:[#allocation2 + $0x68] sm:$0xff]
      %v387 = vld [vmem:[#allocation2 + $0x70] sm:$0xff]
      %v388 = vld [vmem:[#allocation2 + $0x78] sm:$0xff]
      %v389 = vld [vmem:[#allocation8] sm:$0xf]
      %v390 = vld [vmem:[#allocation8 + $0x4] sm:$0xf]
      %v391 = vld [vmem:[#allocation8 + $0x8] sm:$0xf]
      %v392 = vld [vmem:[#allocation8 + $0xc] sm:$0xf]
      %v393 = vld [vmem:[#allocation8 + $0x10] sm:$0xf]
      %v394 = vld [vmem:[#allocation8 + $0x14] sm:$0xf]
      %v395 = vld [vmem:[#allocation8 + $0x18] sm:$0xf]
      %v396 = vld [vmem:[#allocation8 + $0x1c] sm:$0xf]
      %v397 = vld [vmem:[#allocation8 + $0x20] sm:$0xf]
      %v398 = vld [vmem:[#allocation8 + $0x24] sm:$0xf]
      %v399 = vld [vmem:[#allocation8 + $0x28] sm:$0xf]
      %v400 = vld [vmem:[#allocation8 + $0x2c] sm:$0xf]
      %v401 = vld [vmem:[#allocation8 + $0x30] sm:$0xf]
      %v402 = vld [vmem:[#allocation8 + $0x34] sm:$0xf]
      %v403 = vld [vmem:[#allocation8 + $0x38] sm:$0xf]
      %v404 = vld [vmem:[#allocation8 + $0x3c] sm:$0xf]
      %v405 = vunpack.c.l.bf16 %v389
      %v406 = vunpack.c.l.bf16 %v390
      %v407 = vunpack.c.l.bf16 %v391
      %v408 = vunpack.c.l.bf16 %v392
      %v409 = vunpack.c.l.bf16 %v393
      %v410 = vunpack.c.l.bf16 %v394
      %v411 = vunpack.c.l.bf16 %v395
      %v412 = vunpack.c.l.bf16 %v396
      %v413 = vunpack.c.l.bf16 %v397
      %v414 = vunpack.c.l.bf16 %v398
      %v415 = vunpack.c.l.bf16 %v399
      %v416 = vunpack.c.l.bf16 %v400
      %v417 = vunpack.c.l.bf16 %v401
      %v418 = vunpack.c.l.bf16 %v402
      %v419 = vunpack.c.l.bf16 %v403
      %v420 = vunpack.c.l.bf16 %v404
      %v421 = vpack.c.bf16 %v374, %v373
      %v422 = vpack.c.bf16 %v406, %v405
      %v423 = vpack.c.bf16 %v376, %v375
      %v424 = vpack.c.bf16 %v408, %v407
      %v425 = vpack.c.bf16 %v378, %v377
      %v426 = vpack.c.bf16 %v410, %v409
      %v427 = vpack.c.bf16 %v380, %v379
      %v428 = vpack.c.bf16 %v412, %v411
      %v429 = vpack.c.bf16 %v382, %v381
      %v430 = vpack.c.bf16 %v414, %v413
      %v431 = vpack.c.bf16 %v384, %v383
      %v432 = vpack.c.bf16 %v416, %v415
      %v433 = vpack.c.bf16 %v386, %v385
      %v434 = vpack.c.bf16 %v418, %v417
      %v435 = vpack.c.bf16 %v388, %v387
      %v436 = vpack.c.bf16 %v420, %v419
      %v437 = vld [vmem:[#allocation9] sm:$0xf]
      %v438 = vld [vmem:[#allocation9 + $0x4] sm:$0xf]
      %v439 = vld [vmem:[#allocation9 + $0x8] sm:$0xf]
      %v440 = vld [vmem:[#allocation9 + $0xc] sm:$0xf]
      %v441 = vld [vmem:[#allocation9 + $0x10] sm:$0xf]
      %v442 = vld [vmem:[#allocation9 + $0x14] sm:$0xf]
      %v443 = vld [vmem:[#allocation9 + $0x18] sm:$0xf]
      %v444 = vld [vmem:[#allocation9 + $0x1c] sm:$0xf]
      %v445 = vld [vmem:[#allocation9 + $0x20] sm:$0xf]
      %v446 = vld [vmem:[#allocation9 + $0x24] sm:$0xf]
      %v447 = vld [vmem:[#allocation9 + $0x28] sm:$0xf]
      %v448 = vld [vmem:[#allocation9 + $0x2c] sm:$0xf]
      %v449 = vld [vmem:[#allocation9 + $0x30] sm:$0xf]
      %v450 = vld [vmem:[#allocation9 + $0x34] sm:$0xf]
      %v451 = vld [vmem:[#allocation9 + $0x38] sm:$0xf]
      %v452 = vld [vmem:[#allocation9 + $0x3c] sm:$0xf]
      %v453 = vld [vmem:[#allocation9 + $0x40] sm:$0xf]
      %v454 = vld [vmem:[#allocation9 + $0x44] sm:$0xf]
      %v455 = vld [vmem:[#allocation9 + $0x48] sm:$0xf]
      %v456 = vld [vmem:[#allocation9 + $0x4c] sm:$0xf]
      %v457 = vld [vmem:[#allocation9 + $0x50] sm:$0xf]
      %v458 = vld [vmem:[#allocation9 + $0x54] sm:$0xf]
      %v459 = vld [vmem:[#allocation9 + $0x58] sm:$0xf]
      %v460 = vld [vmem:[#allocation9 + $0x5c] sm:$0xf]
      %v461 = vld [vmem:[#allocation9 + $0x60] sm:$0xf]
      %v462 = vld [vmem:[#allocation9 + $0x64] sm:$0xf]
      %v463 = vld [vmem:[#allocation9 + $0x68] sm:$0xf]
      %v464 = vld [vmem:[#allocation9 + $0x6c] sm:$0xf]
      %v465 = vld [vmem:[#allocation9 + $0x70] sm:$0xf]
      %v466 = vld [vmem:[#allocation9 + $0x74] sm:$0xf]
      %v467 = vld [vmem:[#allocation9 + $0x78] sm:$0xf]
      %v468 = vld [vmem:[#allocation9 + $0x7c] sm:$0xf]
      %v469 = vld [vmem:[%s4] sm:$0x1]
      %v471 = vlaneseq
      %v472 = vshrl.u32 %v471, 7
      %v473 = vsub.s32 0, %v472
      %v474 = vrot.slane %v469, %v473
      %v508 = vunpack.c.l.b16 %v437
      %v509 = vunpack.c.l.b16 %v438
      %v510 = vunpack.c.l.b16 %v439
      %v511 = vunpack.c.l.b16 %v440
      %v512 = vunpack.c.l.b16 %v441
      %v513 = vunpack.c.l.b16 %v442
      %v514 = vunpack.c.l.b16 %v443
      %v515 = vunpack.c.l.b16 %v444
      %v516 = vunpack.c.l.b16 %v445
      %v517 = vunpack.c.l.b16 %v446
      %v518 = vunpack.c.l.b16 %v447
      %v519 = vunpack.c.l.b16 %v448
      %v520 = vunpack.c.l.b16 %v449
      %v521 = vunpack.c.l.b16 %v450
      %v522 = vunpack.c.l.b16 %v451
      %v523 = vunpack.c.l.b16 %v452
      %v524 = vunpack.c.l.b16 %v453
      %v525 = vunpack.c.l.b16 %v454
      %v526 = vunpack.c.l.b16 %v455
      %v527 = vunpack.c.l.b16 %v456
      %v528 = vunpack.c.l.b16 %v457
      %v529 = vunpack.c.l.b16 %v458
      %v530 = vunpack.c.l.b16 %v459
      %v531 = vunpack.c.l.b16 %v460
      %v532 = vunpack.c.l.b16 %v461
      %v533 = vunpack.c.l.b16 %v462
      %v534 = vunpack.c.l.b16 %v463
      %v535 = vunpack.c.l.b16 %v464
      %v536 = vunpack.c.l.b16 %v465
      %v537 = vunpack.c.l.b16 %v466
      %v538 = vunpack.c.l.b16 %v467
      %v539 = vunpack.c.l.b16 %v468
      %v540 = vpack.c.b16 %v509, %v508
      %v541 = vpack.c.b16 %v511, %v510
      %v542 = vpack.c.b16 %v513, %v512
      %v543 = vpack.c.b16 %v515, %v514
      %v544 = vpack.c.b16 %v517, %v516
      %v545 = vpack.c.b16 %v519, %v518
      %v546 = vpack.c.b16 %v521, %v520
      %v547 = vpack.c.b16 %v523, %v522
      %v548 = vpack.c.b16 %v525, %v524
      %v549 = vpack.c.b16 %v527, %v526
      %v550 = vpack.c.b16 %v529, %v528
      %v551 = vpack.c.b16 %v531, %v530
      %v552 = vpack.c.b16 %v533, %v532
      %v553 = vpack.c.b16 %v535, %v534
      %v554 = vpack.c.b16 %v537, %v536
      %v555 = vpack.c.b16 %v539, %v538
      %572 = vmatprep.subr.bf16.mxu0 0
      %573 = vmatpush1.bf16.msra.mxu0 %v540
      %574 = vmatprep.subr.bf16.mxu0 0
      %575 = vmatpush1.bf16.msra.mxu0 %v541
      %576 = vmatprep.subr.bf16.mxu0 0
      %577 = vmatpush1.bf16.msra.mxu0 %v542
      %578 = vmatprep.subr.bf16.mxu0 0
      %579 = vmatpush1.bf16.msra.mxu0 %v543
      %580 = vmatprep.subr.bf16.mxu0 0
      %581 = vmatpush1.bf16.msra.mxu0 %v544
      %582 = vmatprep.subr.bf16.mxu0 0
      %583 = vmatpush1.bf16.msra.mxu0 %v545
      %584 = vmatprep.subr.bf16.mxu0 0
      %585 = vmatpush1.bf16.msra.mxu0 %v546
      %586 = vmatprep.subr.bf16.mxu0 0
      %587 = vmatpush1.bf16.msra.mxu0 %v547
      %588 = vmatprep.subr.bf16.mxu0 0
      %589 = vmatpush1.bf16.msra.mxu0 %v548
      %590 = vmatprep.subr.bf16.mxu0 0
      %591 = vmatpush1.bf16.msra.mxu0 %v549
      %592 = vmatprep.subr.bf16.mxu0 0
      %593 = vmatpush1.bf16.msra.mxu0 %v550
      %594 = vmatprep.subr.bf16.mxu0 0
      %595 = vmatpush1.bf16.msra.mxu0 %v551
      %596 = vmatprep.subr.bf16.mxu0 0
      %597 = vmatpush1.bf16.msra.mxu0 %v552
      %598 = vmatprep.subr.bf16.mxu0 0
      %599 = vmatpush1.bf16.msra.mxu0 %v553
      %600 = vmatprep.subr.bf16.mxu0 0
      %601 = vmatpush1.bf16.msra.mxu0 %v554
      %602 = vmatprep.subr.bf16.mxu0 0
      %603 = vmatpush1.bf16.msra.mxu0 %v555
      %604 = vmatprep.mubr.bf16.mxu0 %v422
      %605 = vmatmul.mubr.bf16.gmra.mrb[0].mxu0 %v421
      %v606 = vpop.f32.mrb[0].mxu0
      %v607 = vadd.f32 %v474, %v606
      %v608 = vpop.f32.mrb[0].mxu0
      %v609 = vpop.f32.mrb[0].mxu0
      %v610 = vadd.f32 %v474, %v609
      %v611 = vpop.f32.mrb[0].mxu0
      %612 = vmatprep.mubr.bf16.mxu0 %v424
      %613 = vmatmul.mubr.bf16.gmra.mrb[0].mxu0 %v423
      %v614 = vpop.f32.mrb[0].mxu0
      %v615 = vadd.f32 %v474, %v614
      %v616 = vpop.f32.mrb[0].mxu0
      %v617 = vpop.f32.mrb[0].mxu0
      %v618 = vadd.f32 %v474, %v617
      %v619 = vpop.f32.mrb[0].mxu0
      %620 = vmatprep.mubr.bf16.mxu0 %v426
      %621 = vmatmul.mubr.bf16.gmra.mrb[0].mxu0 %v425
      %v622 = vpop.f32.mrb[0].mxu0
      %v623 = vadd.f32 %v474, %v622
      %v624 = vpop.f32.mrb[0].mxu0
      %v625 = vpop.f32.mrb[0].mxu0
      %v626 = vadd.f32 %v474, %v625
      %v627 = vpop.f32.mrb[0].mxu0
      %628 = vmatprep.mubr.bf16.mxu0 %v428
      %629 = vmatmul.mubr.bf16.gmra.mrb[0].mxu0 %v427
      %v630 = vpop.f32.mrb[0].mxu0
      %v631 = vadd.f32 %v474, %v630
      %v632 = vpop.f32.mrb[0].mxu0
      %v633 = vpop.f32.mrb[0].mxu0
      %v634 = vadd.f32 %v474, %v633
      %v635 = vpop.f32.mrb[0].mxu0
      %636 = vmatprep.mubr.bf16.mxu0 %v430
      %637 = vmatmul.mubr.bf16.gmra.mrb[0].mxu0 %v429
      %v638 = vpop.f32.mrb[0].mxu0
      %v639 = vadd.f32 %v474, %v638
      %v640 = vpop.f32.mrb[0].mxu0
      %v641 = vpop.f32.mrb[0].mxu0
      %v642 = vadd.f32 %v474, %v641
      %v643 = vpop.f32.mrb[0].mxu0
      %644 = vmatprep.mubr.bf16.mxu0 %v432
      %645 = vmatmul.mubr.bf16.gmra.mrb[0].mxu0 %v431
      %v646 = vpop.f32.mrb[0].mxu0
      %v647 = vadd.f32 %v474, %v646
      %v648 = vpop.f32.mrb[0].mxu0
      %v649 = vpop.f32.mrb[0].mxu0
      %v650 = vadd.f32 %v474, %v649
      %v651 = vpop.f32.mrb[0].mxu0
      %652 = vmatprep.mubr.bf16.mxu0 %v434
      %653 = vmatmul.mubr.bf16.gmra.mrb[0].mxu0 %v433
      %v654 = vpop.f32.mrb[0].mxu0
      %v655 = vadd.f32 %v474, %v654
      %v656 = vpop.f32.mrb[0].mxu0
      %v657 = vpop.f32.mrb[0].mxu0
      %v658 = vadd.f32 %v474, %v657
      %v659 = vpop.f32.mrb[0].mxu0
      %660 = vmatprep.mubr.bf16.mxu0 %v436
      %661 = vmatmul.mubr.bf16.gmra.mrb[0].mxu0 %v435
      %v662 = vpop.f32.mrb[0].mxu0
      %v663 = vadd.f32 %v474, %v662
      %v664 = vpop.f32.mrb[0].mxu0
      %v665 = vpop.f32.mrb[0].mxu0
      %v666 = vadd.f32 %v474, %v665
      %v667 = vpop.f32.mrb[0].mxu0
      %668 = vdwg.mxu0
      %v669 = vmax.f32 %v607, 0.0
      %v670 = vmax.f32 %v610, 0.0
      %v671 = vmax.f32 %v615, 0.0
      %v672 = vmax.f32 %v618, 0.0
      %v673 = vmax.f32 %v623, 0.0
      %v674 = vmax.f32 %v626, 0.0
      %v675 = vmax.f32 %v631, 0.0
      %v676 = vmax.f32 %v634, 0.0
      %v677 = vmax.f32 %v639, 0.0
      %v678 = vmax.f32 %v642, 0.0
      %v679 = vmax.f32 %v647, 0.0
      %v680 = vmax.f32 %v650, 0.0
      %v681 = vmax.f32 %v655, 0.0
      %v682 = vmax.f32 %v658, 0.0
      %v683 = vmax.f32 %v663, 0.0
      %v684 = vmax.f32 %v666, 0.0
      %v685 = vpack.c.bf16 %v670, %v669
      %v686 = vpack.c.bf16 %v672, %v671
      %v687 = vpack.c.bf16 %v674, %v673
      %v688 = vpack.c.bf16 %v676, %v675
      %v689 = vpack.c.bf16 %v678, %v677
      %v690 = vpack.c.bf16 %v680, %v679
      %v691 = vpack.c.bf16 %v682, %v681
      %v692 = vpack.c.bf16 %v684, %v683
      %v701 = vunpack.c.l.b16 %v685
      %v702 = vunpack.c.h.b16 %v685
      %v703 = vunpack.c.l.b16 %v686
      %v704 = vunpack.c.h.b16 %v686
      %v705 = vunpack.c.l.b16 %v687
      %v706 = vunpack.c.h.b16 %v687
      %v707 = vunpack.c.l.b16 %v688
      %v708 = vunpack.c.h.b16 %v688
      %v709 = vunpack.c.l.b16 %v689
      %v710 = vunpack.c.h.b16 %v689
      %v711 = vunpack.c.l.b16 %v690
      %v712 = vunpack.c.h.b16 %v690
      %v713 = vunpack.c.l.b16 %v691
      %v714 = vunpack.c.h.b16 %v691
      %v715 = vunpack.c.l.b16 %v692
      %v716 = vunpack.c.h.b16 %v692
      %v717 = vpack.c.b16 %v701, %v701
      %v718 = vpack.c.b16 %v702, %v702
      %v719 = vpack.c.b16 %v703, %v703
      %v720 = vpack.c.b16 %v704, %v704
      %v721 = vpack.c.b16 %v705, %v705
      %v722 = vpack.c.b16 %v706, %v706
      %v723 = vpack.c.b16 %v707, %v707
      %v724 = vpack.c.b16 %v708, %v708
      %v725 = vpack.c.b16 %v709, %v709
      %v726 = vpack.c.b16 %v710, %v710
      %v727 = vpack.c.b16 %v711, %v711
      %v728 = vpack.c.b16 %v712, %v712
      %v729 = vpack.c.b16 %v713, %v713
      %v730 = vpack.c.b16 %v714, %v714
      %v731 = vpack.c.b16 %v715, %v715
      %v732 = vpack.c.b16 %v716, %v716
      %749 = vst [vmem:[#allocation11] sm:$0xf] %v717
      %750 = vst [vmem:[#allocation11 + $0x4] sm:$0xf] %v718
      %751 = vst [vmem:[#allocation11 + $0x8] sm:$0xf] %v719
      %752 = vst [vmem:[#allocation11 + $0xc] sm:$0xf] %v720
      %753 = vst [vmem:[#allocation11 + $0x10] sm:$0xf] %v721
      %754 = vst [vmem:[#allocation11 + $0x14] sm:$0xf] %v722
      %755 = vst [vmem:[#allocation11 + $0x18] sm:$0xf] %v723
      %756 = vst [vmem:[#allocation11 + $0x1c] sm:$0xf] %v724
      %757 = vst [vmem:[#allocation11 + $0x20] sm:$0xf] %v725
      %758 = vst [vmem:[#allocation11 + $0x24] sm:$0xf] %v726
      %759 = vst [vmem:[#allocation11 + $0x28] sm:$0xf] %v727
      %760 = vst [vmem:[#allocation11 + $0x2c] sm:$0xf] %v728
      %761 = vst [vmem:[#allocation11 + $0x30] sm:$0xf] %v729
      %762 = vst [vmem:[#allocation11 + $0x34] sm:$0xf] %v730
      %763 = vst [vmem:[#allocation11 + $0x38] sm:$0xf] %v731
      %764 = vst [vmem:[#allocation11 + $0x3c] sm:$0xf] %v732
    $region45: #{tpu_custom_call.1} parent=1 // pred_fallthru
      _
    // Predicated region
    $region46: #{tpu_custom_call.1} parent=1 // pred_check
      _
    $region47: #{tpu_custom_call.1} parent=1 // pred_check_branch
      %766 = sbr.rel (0) target = $region49
    $region48: #{tpu_custom_call.1} parent=1 // pred_region
      %s768 = ssub.s32 1024, 1024
      %769 = vsyncadd [#allocation5], %s768
      %s770 = sshll.u32 [#allocation11], 4
      %s771 = int_to_ptr.vmem [resolvable:$true] %s770
      %776 = dma.vmem_to_hbm [thread:$0]  %s771, 1024, %s5, [#allocation5], 64, 64, 4
    $region49: #{tpu_custom_call.1} parent=1 // pred_fallthru
      _
    // Predicated region
    $region50: #{tpu_custom_call.1} parent=1 // pred_check
      _
    $region51: #{tpu_custom_call.1} parent=1 // pred_check_branch
      %778 = sbr.rel (0) target = $region53
    $region52: #{tpu_custom_call.1} parent=1 // pred_region
      %779 = dma.done [#allocation5], 1024
    $region53: #{tpu_custom_call.1} parent=1 // pred_fallthru
      _
    %780 = vsyncpa [#allocation4], 1
    %781 = vsyncpa [#allocation7], 1
    %782 = vsyncpa [#allocation10], 1
    %783 = vsyncpa [#allocation5], 1

</llo_original>
